<compile_context>
chip_gen: v7x
topology: tpu7x:2x2x1
jax: 0.10.0
libtpu: 0.0.40
codegen_flags: <defaults>
</compile_context>

<pallas_src>
import functools

import jax
import jax.numpy as jnp
from jax import lax
from jax.experimental import pallas as pl
from jax.experimental.pallas import tpu as pltpu

# Contract the last dim of both operands: lhs @ rhs^T ("NT" matmul).
_NT_DIMS = (((1,), (1,)), ((), ()))


def _mlp_kernel(x_ref,
                w1_ref, b1_ref,
                w2_ref, b2_ref,
                w3_ref, b3_ref,
                w4_ref, b4_ref,
                w6_ref, b6_ref,
                o_ref,
                *, n_chunks, chunk):
    """Fused MLP on one (tile_b, 3) batch-major input block.

    Internally the activations are feature-major (feat, chunk) so the hidden
    widths (12/8/10/12) sit on sublanes and the batch chunk is lane-dense,
    keeping the dominant EUP tanh stream and the output stores dense.
    The first layer uses an NT dot_general so the batch-major -> feature-major
    relayout rides the MXU; no explicit transposes are emitted.
    """
    # Hoist the tiny weights/biases once (avoid per-chunk re-loads).
    w1 = w1_ref[...]; b1 = b1_ref[...]
    w2 = w2_ref[...]; b2 = b2_ref[...]
    w3 = w3_ref[...]; b3 = b3_ref[...]
    w4 = w4_ref[...]; b4 = b4_ref[...]
    w6 = w6_ref[...]; b6 = b6_ref[...]

    for c in range(n_chunks):            # static, fully unrolled chunk loop
        start = c * chunk
        xc = x_ref[pl.ds(start, chunk), :]                       # (chunk, 3)
        # fc1 (relayout fused into the matmul): (12,3) x (chunk,3)^T -> (12,chunk)
        h = jnp.tanh(
            lax.dot_general(w1, xc, _NT_DIMS,
                            preferred_element_type=jnp.float32) + b1)
        # fc2..fc4: standard feature-major NN dots + tanh.
        h = jnp.tanh(jnp.dot(w2, h, preferred_element_type=jnp.float32) + b2)
        h = jnp.tanh(jnp.dot(w3, h, preferred_element_type=jnp.float32) + b3)
        h = jnp.tanh(jnp.dot(w4, h, preferred_element_type=jnp.float32) + b4)
        # fc6 (linear).
        y = jnp.dot(w6, h, preferred_element_type=jnp.float32) + b6  # (3,chunk)
        # Lane-dense, 128-aligned store into the (3, tile_b) output block.
        o_ref[:, pl.ds(start, chunk)] = y.astype(o_ref.dtype)


def init_params(key):
    """nn.Linear-style init (uniform in [-1/sqrt(fan_in), 1/sqrt(fan_in)]).

    Weights are (out_features, in_features) — same as PyTorch — and biases are
    (out_features, 1) so they broadcast along the lane (batch) axis.
    """
    dims = [(3, 12), (12, 8), (8, 10), (10, 12), (12, 3)]  # (in, out) per layer
    params = []
    for fan_in, fan_out in dims:
        key, kw, kb = jax.random.split(key, 3)
        bound = 1.0 / jnp.sqrt(jnp.float32(fan_in))
        w = jax.random.uniform(kw, (fan_out, fan_in), jnp.float32,
                               minval=-bound, maxval=bound)
        b = jax.random.uniform(kb, (fan_out, 1), jnp.float32,
                               minval=-bound, maxval=bound)
        params.append((w, b))
    return params


def _choose_tile(batch, max_tile):
    """Largest 128-multiple tile that divides batch, keeping >=2 grid steps
    (when batch allows) so v7x's two TensorCores both get work."""
    cap = min(max_tile, batch)
    if batch >= 256:
        cap = min(cap, batch // 2)
    best = 128
    t = 128
    while t <= cap:
        if batch % t == 0:
            best = t
        t += 128
    return best


@functools.partial(jax.jit, static_argnames=("tile_b",))
def net_forward(x, params, *, tile_b=1024):
    """Runs the fused MLP as one Pallas kernel, tiled over batch."""
    batch, in_dim = x.shape
    assert in_dim == 3
    assert batch % 128 == 0, "batch must be a multiple of 128"

    tile = _choose_tile(batch, tile_b)
    chunk = 128
    n_chunks = tile // chunk

    flat_params = []
    for (w, b) in params:
        flat_params.extend([w, b])

    # Tiny params -> resident in VMEM for the whole call, outside the
    # double-buffered BlockSpec pipeline (no per-step DMA descriptors).
    param_spec = pl.BlockSpec(memory_space=pltpu.MemorySpace.VMEM)

    in_specs = [pl.BlockSpec((tile, in_dim), lambda i: (i, 0))]
    in_specs += [param_spec] * len(flat_params)

    out_dim = params[-1][0].shape[0]
    out_specs = pl.BlockSpec((out_dim, tile), lambda i: (0, i))

    kernel = functools.partial(_mlp_kernel, n_chunks=n_chunks, chunk=chunk)

    y_fm = pl.pallas_call(
        kernel,
        out_shape=jax.ShapeDtypeStruct((out_dim, batch), x.dtype),
        grid_spec=pltpu.PrefetchScalarGridSpec(
            num_scalar_prefetch=0,
            grid=(batch // tile,),          # "parallel" -> shards over v7x TCs
            in_specs=in_specs,
            out_specs=out_specs,
        ),
        compiler_params=pltpu.CompilerParams(
            dimension_semantics=("parallel",)),
    )(x, *flat_params)

    # Single remaining layout op: (3, batch) -> (batch, 3).  If the consumer
    # can take feature-major activations, return y_fm directly and skip it.
    return y_fm.T


def net_forward_ref(x, params):
    """Pure-JAX reference of the same forward pass (PyTorch semantics)."""
    h = x
    for i, (w, b) in enumerate(params):
        h = h @ w.T + b[:, 0]
        if i < len(params) - 1:
            h = jnp.tanh(h)
    return h


if __name__ == "__main__":
    key = jax.random.PRNGKey(0)
    kp, kx = jax.random.split(key)

    params = init_params(kp)

    # Two sizes: small batch (tile clamps to 128, grid=(2,)) and a larger one
    # exercising the 1024-wide tile with the unrolled 128-lane chunk loop.
    for batch in (256, 2048):
        x = jax.random.normal(jax.random.fold_in(kx, batch), (batch, 3),
                              jnp.float32)
        out = jax.block_until_ready(net_forward(x, params))
        ref = net_forward_ref(x, params)
        assert out.shape == (batch, 3)
        assert jnp.allclose(out, ref, atol=1e-5, rtol=1e-5), (
            f"mismatch vs reference at batch={batch}")

    print("KERNEL_OK")
</pallas_src>

<mosaic_0001>
module attributes {stable_mosaic.version = 11 : i64} {
  func.func @_mlp_kernel(%arg0: i32, %arg1: memref<128x3xf32, #tpu.memory_space<vmem>>, %arg2: memref<12x3xf32, #tpu.memory_space<vmem>>, %arg3: memref<12x1xf32, #tpu.memory_space<vmem>>, %arg4: memref<8x12xf32, #tpu.memory_space<vmem>>, %arg5: memref<8x1xf32, #tpu.memory_space<vmem>>, %arg6: memref<10x8xf32, #tpu.memory_space<vmem>>, %arg7: memref<10x1xf32, #tpu.memory_space<vmem>>, %arg8: memref<12x10xf32, #tpu.memory_space<vmem>>, %arg9: memref<12x1xf32, #tpu.memory_space<vmem>>, %arg10: memref<3x12xf32, #tpu.memory_space<vmem>>, %arg11: memref<3x1xf32, #tpu.memory_space<vmem>>, %arg12: memref<3x128xf32, #tpu.memory_space<vmem>>) attributes {dimension_semantics = [#tpu.dimension_semantics<parallel>], iteration_bounds = array<i64: 2>, scalar_prefetch = 0 : i64, scratch_operands = 0 : i64, tpu.core_type = #tpu.core_type<tc>, window_params = [{transform_indices = @transform_0, window_bounds = array<i64: 128, 3>}, {pipeline_mode = #tpu.pipeline_mode<synchronous>, transform_indices = @transform_1, window_bounds = array<i64: 12, 3>}, {pipeline_mode = #tpu.pipeline_mode<synchronous>, transform_indices = @transform_2, window_bounds = array<i64: 12, 1>}, {pipeline_mode = #tpu.pipeline_mode<synchronous>, transform_indices = @transform_3, window_bounds = array<i64: 8, 12>}, {pipeline_mode = #tpu.pipeline_mode<synchronous>, transform_indices = @transform_4, window_bounds = array<i64: 8, 1>}, {pipeline_mode = #tpu.pipeline_mode<synchronous>, transform_indices = @transform_5, window_bounds = array<i64: 10, 8>}, {pipeline_mode = #tpu.pipeline_mode<synchronous>, transform_indices = @transform_6, window_bounds = array<i64: 10, 1>}, {pipeline_mode = #tpu.pipeline_mode<synchronous>, transform_indices = @transform_7, window_bounds = array<i64: 12, 10>}, {pipeline_mode = #tpu.pipeline_mode<synchronous>, transform_indices = @transform_8, window_bounds = array<i64: 12, 1>}, {pipeline_mode = #tpu.pipeline_mode<synchronous>, transform_indices = @transform_9, window_bounds = array<i64: 3, 12>}, {pipeline_mode = #tpu.pipeline_mode<synchronous>, transform_indices = @transform_10, window_bounds = array<i64: 3, 1>}, {transform_indices = @transform_11, window_bounds = array<i64: 3, 128>}]} {
    %c0 = arith.constant 0 : index
    %c0_0 = arith.constant 0 : index
    %0 = vector.load %arg2[%c0, %c0_0] : memref<12x3xf32, #tpu.memory_space<vmem>>, vector<12x3xf32>
    %c0_1 = arith.constant 0 : index
    %c0_2 = arith.constant 0 : index
    %1 = vector.load %arg3[%c0_1, %c0_2] : memref<12x1xf32, #tpu.memory_space<vmem>>, vector<12x1xf32>
    %c0_3 = arith.constant 0 : index
    %c0_4 = arith.constant 0 : index
    %2 = vector.load %arg4[%c0_3, %c0_4] : memref<8x12xf32, #tpu.memory_space<vmem>>, vector<8x12xf32>
    %c0_5 = arith.constant 0 : index
    %c0_6 = arith.constant 0 : index
    %3 = vector.load %arg5[%c0_5, %c0_6] : memref<8x1xf32, #tpu.memory_space<vmem>>, vector<8x1xf32>
    %c0_7 = arith.constant 0 : index
    %c0_8 = arith.constant 0 : index
    %4 = vector.load %arg6[%c0_7, %c0_8] : memref<10x8xf32, #tpu.memory_space<vmem>>, vector<10x8xf32>
    %c0_9 = arith.constant 0 : index
    %c0_10 = arith.constant 0 : index
    %5 = vector.load %arg7[%c0_9, %c0_10] : memref<10x1xf32, #tpu.memory_space<vmem>>, vector<10x1xf32>
    %c0_11 = arith.constant 0 : index
    %c0_12 = arith.constant 0 : index
    %6 = vector.load %arg8[%c0_11, %c0_12] : memref<12x10xf32, #tpu.memory_space<vmem>>, vector<12x10xf32>
    %c0_13 = arith.constant 0 : index
    %c0_14 = arith.constant 0 : index
    %7 = vector.load %arg9[%c0_13, %c0_14] : memref<12x1xf32, #tpu.memory_space<vmem>>, vector<12x1xf32>
    %c0_15 = arith.constant 0 : index
    %c0_16 = arith.constant 0 : index
    %8 = vector.load %arg10[%c0_15, %c0_16] : memref<3x12xf32, #tpu.memory_space<vmem>>, vector<3x12xf32>
    %c0_17 = arith.constant 0 : index
    %c0_18 = arith.constant 0 : index
    %9 = vector.load %arg11[%c0_17, %c0_18] : memref<3x1xf32, #tpu.memory_space<vmem>>, vector<3x1xf32>
    %c0_19 = arith.constant 0 : index
    %c0_20 = arith.constant 0 : index
    %10 = vector.load %arg1[%c0_19, %c0_20] : memref<128x3xf32, #tpu.memory_space<vmem>>, vector<128x3xf32>
    %cst = arith.constant dense<0.000000e+00> : vector<12x128xf32>
    %11 = tpu.matmul %0, %10, %cst {dimension_numbers = #tpu.dot_dimension_numbers<[1], [1], [0], [0], [0, 0, 1, 0], [], []>} : vector<12x3xf32>, vector<128x3xf32>, vector<12x128xf32> -> vector<12x128xf32>
    %12 = vector.broadcast %1 : vector<12x1xf32> to vector<12x128xf32>
    %13 = arith.addf %11, %12 : vector<12x128xf32>
    %14 = math.tanh %13 : vector<12x128xf32>
    %cst_21 = arith.constant dense<0.000000e+00> : vector<8x128xf32>
    %15 = tpu.matmul %2, %14, %cst_21 {dimension_numbers = #tpu.dot_dimension_numbers<[1], [0], [0], [1], [0, 0, 1, 1], [], []>} : vector<8x12xf32>, vector<12x128xf32>, vector<8x128xf32> -> vector<8x128xf32>
    %16 = vector.broadcast %3 : vector<8x1xf32> to vector<8x128xf32>
    %17 = arith.addf %15, %16 : vector<8x128xf32>
    %18 = math.tanh %17 : vector<8x128xf32>
    %cst_22 = arith.constant dense<0.000000e+00> : vector<10x128xf32>
    %19 = tpu.matmul %4, %18, %cst_22 {dimension_numbers = #tpu.dot_dimension_numbers<[1], [0], [0], [1], [0, 0, 1, 1], [], []>} : vector<10x8xf32>, vector<8x128xf32>, vector<10x128xf32> -> vector<10x128xf32>
    %20 = vector.broadcast %5 : vector<10x1xf32> to vector<10x128xf32>
    %21 = arith.addf %19, %20 : vector<10x128xf32>
    %22 = math.tanh %21 : vector<10x128xf32>
    %cst_23 = arith.constant dense<0.000000e+00> : vector<12x128xf32>
    %23 = tpu.matmul %6, %22, %cst_23 {dimension_numbers = #tpu.dot_dimension_numbers<[1], [0], [0], [1], [0, 0, 1, 1], [], []>} : vector<12x10xf32>, vector<10x128xf32>, vector<12x128xf32> -> vector<12x128xf32>
    %24 = vector.broadcast %7 : vector<12x1xf32> to vector<12x128xf32>
    %25 = arith.addf %23, %24 : vector<12x128xf32>
    %26 = math.tanh %25 : vector<12x128xf32>
    %cst_24 = arith.constant dense<0.000000e+00> : vector<3x128xf32>
    %27 = tpu.matmul %8, %26, %cst_24 {dimension_numbers = #tpu.dot_dimension_numbers<[1], [0], [0], [1], [0, 0, 1, 1], [], []>} : vector<3x12xf32>, vector<12x128xf32>, vector<3x128xf32> -> vector<3x128xf32>
    %28 = vector.broadcast %9 : vector<3x1xf32> to vector<3x128xf32>
    %29 = arith.addf %27, %28 : vector<3x128xf32>
    %c0_25 = arith.constant 0 : index
    %c0_26 = arith.constant 0 : index
    %30 = vector.load %arg12[%c0_25, %c0_26] : memref<3x128xf32, #tpu.memory_space<vmem>>, vector<3x128xf32>
    tpu.vector_store %arg12[%c0_25, %c0_26], %29 {strides = array<i32>} : memref<3x128xf32, #tpu.memory_space<vmem>>, vector<3x128xf32>,
    return
  }
  func.func @transform_0(%arg0: i32) -> (i32, i32) {
    %c0_i32 = arith.constant 0 : i32
    %c0_i32_0 = arith.constant 0 : i32
    return %arg0, %c0_i32 : i32, i32
  }
  func.func @transform_1(%arg0: i32) -> (i32, i32) {
    %c0_i32 = arith.constant 0 : i32
    %c0_i32_0 = arith.constant 0 : i32
    %c0_i32_1 = arith.constant 0 : i32
    return %c0_i32, %c0_i32_0 : i32, i32
  }
  func.func @transform_2(%arg0: i32) -> (i32, i32) {
    %c0_i32 = arith.constant 0 : i32
    %c0_i32_0 = arith.constant 0 : i32
    %c0_i32_1 = arith.constant 0 : i32
    return %c0_i32, %c0_i32_0 : i32, i32
  }
  func.func @transform_3(%arg0: i32) -> (i32, i32) {
    %c0_i32 = arith.constant 0 : i32
    %c0_i32_0 = arith.constant 0 : i32
    %c0_i32_1 = arith.constant 0 : i32
    return %c0_i32, %c0_i32_0 : i32, i32
  }
  func.func @transform_4(%arg0: i32) -> (i32, i32) {
    %c0_i32 = arith.constant 0 : i32
    %c0_i32_0 = arith.constant 0 : i32
    %c0_i32_1 = arith.constant 0 : i32
    return %c0_i32, %c0_i32_0 : i32, i32
  }
  func.func @transform_5(%arg0: i32) -> (i32, i32) {
    %c0_i32 = arith.constant 0 : i32
    %c0_i32_0 = arith.constant 0 : i32
    %c0_i32_1 = arith.constant 0 : i32
    return %c0_i32, %c0_i32_0 : i32, i32
  }
  func.func @transform_6(%arg0: i32) -> (i32, i32) {
    %c0_i32 = arith.constant 0 : i32
    %c0_i32_0 = arith.constant 0 : i32
    %c0_i32_1 = arith.constant 0 : i32
    return %c0_i32, %c0_i32_0 : i32, i32
  }
  func.func @transform_7(%arg0: i32) -> (i32, i32) {
    %c0_i32 = arith.constant 0 : i32
    %c0_i32_0 = arith.constant 0 : i32
    %c0_i32_1 = arith.constant 0 : i32
    return %c0_i32, %c0_i32_0 : i32, i32
  }
  func.func @transform_8(%arg0: i32) -> (i32, i32) {
    %c0_i32 = arith.constant 0 : i32
    %c0_i32_0 = arith.constant 0 : i32
    %c0_i32_1 = arith.constant 0 : i32
    return %c0_i32, %c0_i32_0 : i32, i32
  }
  func.func @transform_9(%arg0: i32) -> (i32, i32) {
    %c0_i32 = arith.constant 0 : i32
    %c0_i32_0 = arith.constant 0 : i32
    %c0_i32_1 = arith.constant 0 : i32
    return %c0_i32, %c0_i32_0 : i32, i32
  }
  func.func @transform_10(%arg0: i32) -> (i32, i32) {
    %c0_i32 = arith.constant 0 : i32
    %c0_i32_0 = arith.constant 0 : i32
    %c0_i32_1 = arith.constant 0 : i32
    return %c0_i32, %c0_i32_0 : i32, i32
  }
  func.func @transform_11(%arg0: i32) -> (i32, i32) {
    %c0_i32 = arith.constant 0 : i32
    %c0_i32_0 = arith.constant 0 : i32
    return %c0_i32, %arg0 : i32, i32
  }
}

</mosaic_0001>

<llo_original>
// kernel: net_forward.1
$region0: #{net_forward.1}
  #allocation0 [shape = 'u32[]', space=smem, size = 0x4, offset = 0x4, fixed_abs, tag = 'smem constant byte address 0x4 - core index']
  #allocation1 [shape = 'u32[144,128]{1,0:T(1,128)}', space=vmem, size = 0x12000, scoped, tag = 'internal scratch']
  %s0 = inlined_call_operand.vmem [shape: f32[256,3], index: 0, kind: input, shape index: {}]
  %s1 = inlined_call_operand.vmem [shape: f32[12,3], index: 1, kind: input, shape index: {}]
  %s2 = inlined_call_operand.vmem [shape: f32[12,1], index: 2, kind: input, shape index: {}]
  %s3 = inlined_call_operand.vmem [shape: f32[8,12], index: 3, kind: input, shape index: {}]
  %s4 = inlined_call_operand.vmem [shape: f32[8,1], index: 4, kind: input, shape index: {}]
  %s5 = inlined_call_operand.vmem [shape: f32[10,8], index: 5, kind: input, shape index: {}]
  %s6 = inlined_call_operand.vmem [shape: f32[10,1], index: 6, kind: input, shape index: {}]
  %s7 = inlined_call_operand.vmem [shape: f32[12,10], index: 7, kind: input, shape index: {}]
  %s8 = inlined_call_operand.vmem [shape: f32[12,1], index: 8, kind: input, shape index: {}]
  %s9 = inlined_call_operand.vmem [shape: f32[3,12], index: 9, kind: input, shape index: {}]
  %s10 = inlined_call_operand.vmem [shape: f32[3,1], index: 10, kind: input, shape index: {}]
  %s11 = inlined_call_operand.hbm [shape: f32[3,256], index: 11, kind: output, shape index: {}]
  %s12 = sld [smem:[#allocation0]]
  $region77: #{net_forward.1} parent=0
    _
  %s14 = ssub.s32 1, %s12
  %s15 = scalar_select 0, %s14, %s12
  $region1: #{net_forward.1} parent=0
    #allocation2 [shape = 'u8[4096]{0}', space=vmem, size = 0x1000, scoped, tag = 'output window, operand 0']
    #allocation3 [shape = 's32[2]{0}', space=sflag, size = 0x8, scoped, tag = 'scoped memory for net_forward.1']
    %16 = vsyncpa [#allocation3], 0
    %s17 = scalar_lea.sflag [#allocation3], 1
    %18 = vsyncpa %s17, 0
    loop: start=0, step=1, limit=4
    $region2: #{net_forward.1} parent=1 // loop_pre_header
      _
    $region3: #{net_forward.1} parent=1 // loop_header
      %s20 = sphi 0, %s24
      %p21 = scmp.ge.s32.totalorder %s20, 4
      %s30 = sphi 0, %s32
      %s33 = sphi 0, %s30
      %s34 = sphi 0, %s33
      %s50 = sphi 0, %s34
      %s54 = sphi 0, %s54
      %s56 = sphi 0, %s54
      %s57 = sphi 0, %s56
      %s71 = sphi 0, %s57
      %s75 = sphi 0, %s75
      %s77 = sphi 0, %s75
      %s78 = sphi 0, %s77
      %s92 = sphi 0, %s78
      %s96 = sphi 0, %s96
      %s98 = sphi 0, %s96
      %s99 = sphi 0, %s98
      %s113 = sphi 0, %s99
      %s117 = sphi 0, %s117
      %s119 = sphi 0, %s117
      %s120 = sphi 0, %s119
      %s134 = sphi 0, %s120
      %s138 = sphi 0, %s138
      %s140 = sphi 0, %s138
      %s141 = sphi 0, %s140
      %s155 = sphi 0, %s141
      %s159 = sphi 0, %s159
      %s161 = sphi 0, %s159
      %s162 = sphi 0, %s161
      %s176 = sphi 0, %s162
      %s180 = sphi 0, %s180
      %s182 = sphi 0, %s180
      %s183 = sphi 0, %s182
      %s197 = sphi 0, %s183
      %s201 = sphi 0, %s201
      %s203 = sphi 0, %s201
      %s204 = sphi 0, %s203
      %s218 = sphi 0, %s204
      %s222 = sphi 0, %s222
      %s224 = sphi 0, %s222
      %s225 = sphi 0, %s224
      %s239 = sphi 0, %s225
      %s243 = sphi 0, %s243
      %s245 = sphi 0, %s243
      %s246 = sphi 0, %s245
      %s260 = sphi 0, %s246
      %s266 = sphi 0, %s268
      %s269 = sphi 0, %s266
      %s270 = sphi 0, %s269
      %s286 = sphi 0, %s270
    $region4: #{net_forward.1} parent=1 // loop_header_branch
      %23 = sbr.rel (%p21) target = $region8
    $region5: #{net_forward.1} parent=1 // loop_body
      %s25 = ssub.s32 %s20, 1
      %s26 = ssub.s32 %s20, 2
      %s27 = sadd.s32 %s20, 1
      %s28 = ssub.s32 %s20, %s27
      %p29 = scmp.eq.s32.totalorder %s28, 0
      %s31 = sadd.s32 %s30, 1
      %s32 = scalar_select %p29, %s30, %s31
      %p35 = pneg %p29
      %p36 = scmp.eq.s32.totalorder %s20, 1
      %p37 = por %p35, %p36
      %p38 = scmp.ne.s32.totalorder %s30, %s33
      %p39 = scmp.eq.s32.totalorder %s20, 0
      %p40 = por %p38, %p39
      %p41 = scmp.ne.s32.totalorder %s30, %s33
      %p42 = scmp.eq.s32.totalorder %s25, 1
      %p43 = por %p41, %p42
      %p44 = scmp.ne.s32.totalorder %s33, %s34
      %p45 = scmp.eq.s32.totalorder %s25, 0
      %p46 = por %p44, %p45
      %p47 = scmp.ne.s32.totalorder %s33, %s34
      %p48 = scmp.eq.s32.totalorder %s26, 1
      %p49 = por %p47, %p48
      %p51 = scmp.ne.s32.totalorder %s34, %s50
      %p52 = scmp.eq.s32.totalorder %s26, 0
      %p53 = por %p51, %p52
      %s55 = sadd.s32 %s54, 1
      %p58 = scmp.eq.s32.totalorder %s20, 1
      %p59 = scmp.ne.s32.totalorder %s54, %s56
      %p60 = scmp.eq.s32.totalorder %s20, 0
      %p61 = por %p59, %p60
      %p62 = scmp.ne.s32.totalorder %s54, %s56
      %p63 = scmp.eq.s32.totalorder %s25, 1
      %p64 = por %p62, %p63
      %p65 = scmp.ne.s32.totalorder %s56, %s57
      %p66 = scmp.eq.s32.totalorder %s25, 0
      %p67 = por %p65, %p66
      %p68 = scmp.ne.s32.totalorder %s56, %s57
      %p69 = scmp.eq.s32.totalorder %s26, 1
      %p70 = por %p68, %p69
      %p72 = scmp.ne.s32.totalorder %s57, %s71
      %p73 = scmp.eq.s32.totalorder %s26, 0
      %p74 = por %p72, %p73
      %s76 = sadd.s32 %s75, 1
      %p79 = scmp.eq.s32.totalorder %s20, 1
      %p80 = scmp.ne.s32.totalorder %s75, %s77
      %p81 = scmp.eq.s32.totalorder %s20, 0
      %p82 = por %p80, %p81
      %p83 = scmp.ne.s32.totalorder %s75, %s77
      %p84 = scmp.eq.s32.totalorder %s25, 1
      %p85 = por %p83, %p84
      %p86 = scmp.ne.s32.totalorder %s77, %s78
      %p87 = scmp.eq.s32.totalorder %s25, 0
      %p88 = por %p86, %p87
      %p89 = scmp.ne.s32.totalorder %s77, %s78
      %p90 = scmp.eq.s32.totalorder %s26, 1
      %p91 = por %p89, %p90
      %p93 = scmp.ne.s32.totalorder %s78, %s92
      %p94 = scmp.eq.s32.totalorder %s26, 0
      %p95 = por %p93, %p94
      %s97 = sadd.s32 %s96, 1
      %p100 = scmp.eq.s32.totalorder %s20, 1
      %p101 = scmp.ne.s32.totalorder %s96, %s98
      %p102 = scmp.eq.s32.totalorder %s20, 0
      %p103 = por %p101, %p102
      %p104 = scmp.ne.s32.totalorder %s96, %s98
      %p105 = scmp.eq.s32.totalorder %s25, 1
      %p106 = por %p104, %p105
      %p107 = scmp.ne.s32.totalorder %s98, %s99
      %p108 = scmp.eq.s32.totalorder %s25, 0
      %p109 = por %p107, %p108
      %p110 = scmp.ne.s32.totalorder %s98, %s99
      %p111 = scmp.eq.s32.totalorder %s26, 1
      %p112 = por %p110, %p111
      %p114 = scmp.ne.s32.totalorder %s99, %s113
      %p115 = scmp.eq.s32.totalorder %s26, 0
      %p116 = por %p114, %p115
      %s118 = sadd.s32 %s117, 1
      %p121 = scmp.eq.s32.totalorder %s20, 1
      %p122 = scmp.ne.s32.totalorder %s117, %s119
      %p123 = scmp.eq.s32.totalorder %s20, 0
      %p124 = por %p122, %p123
      %p125 = scmp.ne.s32.totalorder %s117, %s119
      %p126 = scmp.eq.s32.totalorder %s25, 1
      %p127 = por %p125, %p126
      %p128 = scmp.ne.s32.totalorder %s119, %s120
      %p129 = scmp.eq.s32.totalorder %s25, 0
      %p130 = por %p128, %p129
      %p131 = scmp.ne.s32.totalorder %s119, %s120
      %p132 = scmp.eq.s32.totalorder %s26, 1
      %p133 = por %p131, %p132
      %p135 = scmp.ne.s32.totalorder %s120, %s134
      %p136 = scmp.eq.s32.totalorder %s26, 0
      %p137 = por %p135, %p136
      %s139 = sadd.s32 %s138, 1
      %p142 = scmp.eq.s32.totalorder %s20, 1
      %p143 = scmp.ne.s32.totalorder %s138, %s140
      %p144 = scmp.eq.s32.totalorder %s20, 0
      %p145 = por %p143, %p144
      %p146 = scmp.ne.s32.totalorder %s138, %s140
      %p147 = scmp.eq.s32.totalorder %s25, 1
      %p148 = por %p146, %p147
      %p149 = scmp.ne.s32.totalorder %s140, %s141
      %p150 = scmp.eq.s32.totalorder %s25, 0
      %p151 = por %p149, %p150
      %p152 = scmp.ne.s32.totalorder %s140, %s141
      %p153 = scmp.eq.s32.totalorder %s26, 1
      %p154 = por %p152, %p153
      %p156 = scmp.ne.s32.totalorder %s141, %s155
      %p157 = scmp.eq.s32.totalorder %s26, 0
      %p158 = por %p156, %p157
      %s160 = sadd.s32 %s159, 1
      %p163 = scmp.eq.s32.totalorder %s20, 1
      %p164 = scmp.ne.s32.totalorder %s159, %s161
      %p165 = scmp.eq.s32.totalorder %s20, 0
      %p166 = por %p164, %p165
      %p167 = scmp.ne.s32.totalorder %s159, %s161
      %p168 = scmp.eq.s32.totalorder %s25, 1
      %p169 = por %p167, %p168
      %p170 = scmp.ne.s32.totalorder %s161, %s162
      %p171 = scmp.eq.s32.totalorder %s25, 0
      %p172 = por %p170, %p171
      %p173 = scmp.ne.s32.totalorder %s161, %s162
      %p174 = scmp.eq.s32.totalorder %s26, 1
      %p175 = por %p173, %p174
      %p177 = scmp.ne.s32.totalorder %s162, %s176
      %p178 = scmp.eq.s32.totalorder %s26, 0
      %p179 = por %p177, %p178
      %s181 = sadd.s32 %s180, 1
      %p184 = scmp.eq.s32.totalorder %s20, 1
      %p185 = scmp.ne.s32.totalorder %s180, %s182
      %p186 = scmp.eq.s32.totalorder %s20, 0
      %p187 = por %p185, %p186
      %p188 = scmp.ne.s32.totalorder %s180, %s182
      %p189 = scmp.eq.s32.totalorder %s25, 1
      %p190 = por %p188, %p189
      %p191 = scmp.ne.s32.totalorder %s182, %s183
      %p192 = scmp.eq.s32.totalorder %s25, 0
      %p193 = por %p191, %p192
      %p194 = scmp.ne.s32.totalorder %s182, %s183
      %p195 = scmp.eq.s32.totalorder %s26, 1
      %p196 = por %p194, %p195
      %p198 = scmp.ne.s32.totalorder %s183, %s197
      %p199 = scmp.eq.s32.totalorder %s26, 0
      %p200 = por %p198, %p199
      %s202 = sadd.s32 %s201, 1
      %p205 = scmp.eq.s32.totalorder %s20, 1
      %p206 = scmp.ne.s32.totalorder %s201, %s203
      %p207 = scmp.eq.s32.totalorder %s20, 0
      %p208 = por %p206, %p207
      %p209 = scmp.ne.s32.totalorder %s201, %s203
      %p210 = scmp.eq.s32.totalorder %s25, 1
      %p211 = por %p209, %p210
      %p212 = scmp.ne.s32.totalorder %s203, %s204
      %p213 = scmp.eq.s32.totalorder %s25, 0
      %p214 = por %p212, %p213
      %p215 = scmp.ne.s32.totalorder %s203, %s204
      %p216 = scmp.eq.s32.totalorder %s26, 1
      %p217 = por %p215, %p216
      %p219 = scmp.ne.s32.totalorder %s204, %s218
      %p220 = scmp.eq.s32.totalorder %s26, 0
      %p221 = por %p219, %p220
      %s223 = sadd.s32 %s222, 1
      %p226 = scmp.eq.s32.totalorder %s20, 1
      %p227 = scmp.ne.s32.totalorder %s222, %s224
      %p228 = scmp.eq.s32.totalorder %s20, 0
      %p229 = por %p227, %p228
      %p230 = scmp.ne.s32.totalorder %s222, %s224
      %p231 = scmp.eq.s32.totalorder %s25, 1
      %p232 = por %p230, %p231
      %p233 = scmp.ne.s32.totalorder %s224, %s225
      %p234 = scmp.eq.s32.totalorder %s25, 0
      %p235 = por %p233, %p234
      %p236 = scmp.ne.s32.totalorder %s224, %s225
      %p237 = scmp.eq.s32.totalorder %s26, 1
      %p238 = por %p236, %p237
      %p240 = scmp.ne.s32.totalorder %s225, %s239
      %p241 = scmp.eq.s32.totalorder %s26, 0
      %p242 = por %p240, %p241
      %s244 = sadd.s32 %s243, 1
      %p247 = scmp.eq.s32.totalorder %s20, 1
      %p248 = scmp.ne.s32.totalorder %s243, %s245
      %p249 = scmp.eq.s32.totalorder %s20, 0
      %p250 = por %p248, %p249
      %p251 = scmp.ne.s32.totalorder %s243, %s245
      %p252 = scmp.eq.s32.totalorder %s25, 1
      %p253 = por %p251, %p252
      %p254 = scmp.ne.s32.totalorder %s245, %s246
      %p255 = scmp.eq.s32.totalorder %s25, 0
      %p256 = por %p254, %p255
      %p257 = scmp.ne.s32.totalorder %s245, %s246
      %p258 = scmp.eq.s32.totalorder %s26, 1
      %p259 = por %p257, %p258
      %p261 = scmp.ne.s32.totalorder %s246, %s260
      %p262 = scmp.eq.s32.totalorder %s26, 0
      %p263 = por %p261, %p262
      %s264 = ssub.s32 %s20, %s27
      %p265 = scmp.eq.s32.totalorder %s264, 0
      %s267 = sadd.s32 %s266, 1
      %s268 = scalar_select %p265, %s266, %s267
      %p271 = pneg %p265
      %p272 = scmp.eq.s32.totalorder %s20, 1
      %p273 = por %p271, %p272
      %p274 = scmp.ne.s32.totalorder %s266, %s269
      %p275 = scmp.eq.s32.totalorder %s20, 0
      %p276 = por %p274, %p275
      %p277 = scmp.ne.s32.totalorder %s266, %s269
      %p278 = scmp.eq.s32.totalorder %s25, 1
      %p279 = por %p277, %p278
      %p280 = scmp.ne.s32.totalorder %s269, %s270
      %p281 = scmp.eq.s32.totalorder %s25, 0
      %p282 = por %p280, %p281
      %p283 = scmp.ne.s32.totalorder %s269, %s270
      %p284 = scmp.eq.s32.totalorder %s26, 1
      %p285 = por %p283, %p284
      %p287 = scmp.ne.s32.totalorder %s270, %s286
      %p288 = scmp.eq.s32.totalorder %s26, 0
      %p289 = por %p287, %p288
      %p290 = scmp.le.s32.totalorder 1, %s20
      %p291 = scmp.lt.s32.totalorder %s20, 3
      %p292 = pnand %p290, %p291
      %p293 = pneg %p292
      // Predicated region
      $region9: #{net_forward.1} parent=5 // pred_check
        _
      $region10: #{net_forward.1} parent=5 // pred_check_branch
        %295 = sbr.rel (%p292) target = $region12
      $region11: #{net_forward.1} parent=5 // pred_region
        %s296 = ssub.s32 %s20, 1
        // Predicated region
        $region13: #{net_forward.1} parent=11 // pred_check
          %p297 = pneg %p67
        $region14: #{net_forward.1} parent=11 // pred_check_branch
          %299 = sbr.rel (%p297) target = $region16
        $region15: #{net_forward.1} parent=11 // pred_region
          _
        $region16: #{net_forward.1} parent=11 // pred_fallthru
          _
        // Predicated region
        $region17: #{net_forward.1} parent=11 // pred_check
          %p300 = pneg %p88
        $region18: #{net_forward.1} parent=11 // pred_check_branch
          %302 = sbr.rel (%p300) target = $region20
        $region19: #{net_forward.1} parent=11 // pred_region
          _
        $region20: #{net_forward.1} parent=11 // pred_fallthru
          _
        // Predicated region
        $region21: #{net_forward.1} parent=11 // pred_check
          %p303 = pneg %p109
        $region22: #{net_forward.1} parent=11 // pred_check_branch
          %305 = sbr.rel (%p303) target = $region24
        $region23: #{net_forward.1} parent=11 // pred_region
          _
        $region24: #{net_forward.1} parent=11 // pred_fallthru
          _
        // Predicated region
        $region25: #{net_forward.1} parent=11 // pred_check
          %p306 = pneg %p130
        $region26: #{net_forward.1} parent=11 // pred_check_branch
          %308 = sbr.rel (%p306) target = $region28
        $region27: #{net_forward.1} parent=11 // pred_region
          _
        $region28: #{net_forward.1} parent=11 // pred_fallthru
          _
        // Predicated region
        $region29: #{net_forward.1} parent=11 // pred_check
          %p309 = pneg %p151
        $region30: #{net_forward.1} parent=11 // pred_check_branch
          %311 = sbr.rel (%p309) target = $region32
        $region31: #{net_forward.1} parent=11 // pred_region
          _
        $region32: #{net_forward.1} parent=11 // pred_fallthru
          _
        // Predicated region
        $region33: #{net_forward.1} parent=11 // pred_check
          %p312 = pneg %p172
        $region34: #{net_forward.1} parent=11 // pred_check_branch
          %314 = sbr.rel (%p312) target = $region36
        $region35: #{net_forward.1} parent=11 // pred_region
          _
        $region36: #{net_forward.1} parent=11 // pred_fallthru
          _
        // Predicated region
        $region37: #{net_forward.1} parent=11 // pred_check
          %p315 = pneg %p193
        $region38: #{net_forward.1} parent=11 // pred_check_branch
          %317 = sbr.rel (%p315) target = $region40
        $region39: #{net_forward.1} parent=11 // pred_region
          _
        $region40: #{net_forward.1} parent=11 // pred_fallthru
          _
        // Predicated region
        $region41: #{net_forward.1} parent=11 // pred_check
          %p318 = pneg %p214
        $region42: #{net_forward.1} parent=11 // pred_check_branch
          %320 = sbr.rel (%p318) target = $region44
        $region43: #{net_forward.1} parent=11 // pred_region
          _
        $region44: #{net_forward.1} parent=11 // pred_fallthru
          _
        // Predicated region
        $region45: #{net_forward.1} parent=11 // pred_check
          %p321 = pneg %p235
        $region46: #{net_forward.1} parent=11 // pred_check_branch
          %323 = sbr.rel (%p321) target = $region48
        $region47: #{net_forward.1} parent=11 // pred_region
          _
        $region48: #{net_forward.1} parent=11 // pred_fallthru
          _
        // Predicated region
        $region49: #{net_forward.1} parent=11 // pred_check
          %p324 = pneg %p256
        $region50: #{net_forward.1} parent=11 // pred_check_branch
          %326 = sbr.rel (%p324) target = $region52
        $region51: #{net_forward.1} parent=11 // pred_region
          _
        $region52: #{net_forward.1} parent=11 // pred_fallthru
          _
      $region12: #{net_forward.1} parent=5 // pred_fallthru
        _
      %p327 = scmp.lt.s32.totalorder %s20, 2
      // Predicated region
      $region53: #{net_forward.1} parent=5 // pred_check
        %p328 = pneg %p327
      $region54: #{net_forward.1} parent=5 // pred_check_branch
        %330 = sbr.rel (%p328) target = $region56
      $region55: #{net_forward.1} parent=5 // pred_region
        // Predicated region
        $region57: #{net_forward.1} parent=55 // pred_check
          %p331 = pneg %p40
        $region58: #{net_forward.1} parent=55 // pred_check_branch
          %333 = sbr.rel (%p331) target = $region60
        $region59: #{net_forward.1} parent=55 // pred_region
          %s334 = smul.u32 16, %s20
          %p335 = scmp.lt.s32.totalorder %s334, 31
          %s336 = scalar_select %p335, %s334, 31
          %s337 = smul.addr %s336, 8
          %s338 = scalar_lea.vmem %s0, %s337
          %s339 = smul.u32 16, %s20
        $region60: #{net_forward.1} parent=55 // pred_fallthru
          _
      $region56: #{net_forward.1} parent=5 // pred_fallthru
        _
      %p340 = scmp.le.s32.totalorder 1, %s20
      %p341 = scmp.lt.s32.totalorder %s20, 3
      %p342 = pnand %p340, %p341
      %p343 = pneg %p342
      // Predicated region
      $region61: #{net_forward.1} parent=5 // pred_check
        _
      $region62: #{net_forward.1} parent=5 // pred_check_branch
        %345 = sbr.rel (%p342) target = $region64
      $region63: #{net_forward.1} parent=5 // pred_region
        %s346 = ssub.s32 %s20, 1
        %s347 = smul.u32 16, %s25
        %p348 = scmp.lt.s32.totalorder %s347, 31
        %s349 = scalar_select %p348, %s347, 31
        %s350 = smul.addr %s349, 8
        %s351 = scalar_lea.vmem %s0, %s350
        %p352 = pneg %p46
        %p353 = pneg %p43
        %p354 = pneg %p67
        %p355 = pneg %p64
        %p356 = pneg %p88
        %p357 = pneg %p85
        %p358 = pneg %p109
        %p359 = pneg %p106
        %p360 = pneg %p130
        %p361 = pneg %p127
        %p362 = pneg %p151
        %p363 = pneg %p148
        %p364 = pneg %p172
        %p365 = pneg %p169
        %p366 = pneg %p193
        %p367 = pneg %p190
        %p368 = pneg %p214
        %p369 = pneg %p211
        %p370 = pneg %p235
        %p371 = pneg %p232
        %p372 = pneg %p256
        %p373 = pneg %p253
        %p374 = pneg %p282
        %p375 = pneg %p279
        %s376 = sand.u32 %s269, 1
        %s377 = scalar_lea.sflag [#allocation3], %s376
        %s378 = sand.u32 %s269, 1
        %s379 = smul.addr %s378, 4
        %s380 = scalar_lea.vmem [#allocation2], %s379
        %s381 = smul.u32 16, %s25
        %p382 = scmp.lt.s32.totalorder %s381, 31
        %s383 = scalar_select %p382, %s381, 31
        %s384 = smul.addr %s383, 8
        %s385 = scalar_lea.vmem %s0, %s384
        %s386 = smul.u32 16, %s25
        %v387 = vld [vmem:[%s1] sm:$0xff]
        %v388 = vld [vmem:[%s1 + $0x8] sm:$0xf]
        %v389 = vld [vmem:[%s2] sm:$0xff]
        %v390 = vld [vmem:[%s2 + $0x8] sm:$0xf]
        %v391 = vld [vmem:[%s3] sm:$0xff]
        %v392 = vld [vmem:[%s4] sm:$0xff]
        %v393 = vld [vmem:[%s5] sm:$0xff]
        %v394 = vld [vmem:[%s5 + $0x8] sm:$0x3]
        %v395 = vld [vmem:[%s6] sm:$0xff]
        %v396 = vld [vmem:[%s6 + $0x8] sm:$0x3]
        %v397 = vld [vmem:[%s7] sm:$0xff]
        %v398 = vld [vmem:[%s7 + $0x8] sm:$0xf]
        %v399 = vld [vmem:[%s8] sm:$0xff]
        %v400 = vld [vmem:[%s8 + $0x8] sm:$0xf]
        %v401 = vld [vmem:[%s9] sm:$0x7]
        %v402 = vld [vmem:[%s10] sm:$0x7]
        %v403 = vld [vmem:[%s385] sm:$0xff]
        %v404 = vld [vmem:[%s385 + $0x8] sm:$0xff]
        %v405 = vld [vmem:[%s385 + $0x10] sm:$0xff]
        %v406 = vld [vmem:[%s385 + $0x18] sm:$0xff]
        %v407 = vld [vmem:[%s385 + $0x20] sm:$0xff]
        %v408 = vld [vmem:[%s385 + $0x28] sm:$0xff]
        %v409 = vld [vmem:[%s385 + $0x30] sm:$0xff]
        %v410 = vld [vmem:[%s385 + $0x38] sm:$0xff]
        %v411 = vld [vmem:[%s385 + $0x40] sm:$0xff]
        %v412 = vld [vmem:[%s385 + $0x48] sm:$0xff]
        %v413 = vld [vmem:[%s385 + $0x50] sm:$0xff]
        %v414 = vld [vmem:[%s385 + $0x58] sm:$0xff]
        %v415 = vld [vmem:[%s385 + $0x60] sm:$0xff]
        %v416 = vld [vmem:[%s385 + $0x68] sm:$0xff]
        %v417 = vld [vmem:[%s385 + $0x70] sm:$0xff]
        %v418 = vld [vmem:[%s385 + $0x78] sm:$0xff]
        %420 = vset.pattern.permute.xlu0 0
        %421 = vperm.xlu0 %420, %v389
        %v422 = vpop.permute.xlu0 %421
        %425 = vset.pattern.permute.xlu0 0
        %426 = vperm.xlu0 %425, %v390
        %v427 = vpop.permute.xlu0 %426
        %vm429 = vcmask 23552
        %v431 = vsel %vm429, %v387, 0
        %v434 = vsel %vm429, %v388, 0
        %v437 = vsel %vm429, %v403, 0
        %v440 = vsel %vm429, %v404, 0
        %v443 = vsel %vm429, %v405, 0
        %v446 = vsel %vm429, %v406, 0
        %v449 = vsel %vm429, %v407, 0
        %v452 = vsel %vm429, %v408, 0
        %v455 = vsel %vm429, %v409, 0
        %v458 = vsel %vm429, %v410, 0
        %v461 = vsel %vm429, %v411, 0
        %v464 = vsel %vm429, %v412, 0
        %v467 = vsel %vm429, %v413, 0
        %v470 = vsel %vm429, %v414, 0
        %v473 = vsel %vm429, %v415, 0
        %v476 = vsel %vm429, %v416, 0
        %v479 = vsel %vm429, %v417, 0
        %v482 = vsel %vm429, %v418, 0
        %484 = vmatprep.subr.mxu0 0.0
        %485 = vmatpush1.xpose.msra.mxu0 %v437
        %486 = vmatprep.subr.mxu0 0.0
        %487 = vmatpush1.xpose.msra.mxu0 %v440
        %488 = vmatprep.subr.mxu0 0.0
        %489 = vmatpush1.xpose.msra.mxu0 %v443
        %490 = vmatprep.subr.mxu0 0.0
        %491 = vmatpush1.xpose.msra.mxu0 %v446
        %492 = vmatprep.subr.mxu0 0.0
        %493 = vmatpush1.xpose.msra.mxu0 %v449
        %494 = vmatprep.subr.mxu0 0.0
        %495 = vmatpush1.xpose.msra.mxu0 %v452
        %496 = vmatprep.subr.mxu0 0.0
        %497 = vmatpush1.xpose.msra.mxu0 %v455
        %498 = vmatprep.subr.mxu0 0.0
        %499 = vmatpush1.xpose.msra.mxu0 %v458
        %500 = vmatprep.subr.mxu0 0.0
        %501 = vmatpush1.xpose.msra.mxu0 %v461
        %502 = vmatprep.subr.mxu0 0.0
        %503 = vmatpush1.xpose.msra.mxu0 %v464
        %504 = vmatprep.subr.mxu0 0.0
        %505 = vmatpush1.xpose.msra.mxu0 %v467
        %506 = vmatprep.subr.mxu0 0.0
        %507 = vmatpush1.xpose.msra.mxu0 %v470
        %508 = vmatprep.subr.mxu0 0.0
        %509 = vmatpush1.xpose.msra.mxu0 %v473
        %510 = vmatprep.subr.mxu0 0.0
        %511 = vmatpush1.xpose.msra.mxu0 %v476
        %512 = vmatprep.subr.mxu0 0.0
        %513 = vmatpush1.xpose.msra.mxu0 %v479
        %514 = vmatprep.subr.mxu0 0.0
        %515 = vmatpush1.xpose.msra.mxu0 %v482
        %516 = vmatprep.subr.mxu0 0.0
        %517 = vmatpush1.xpose.msra.mxu0 0.0
        %518 = vmatprep.subr.mxu0 0.0
        %519 = vmatpush1.xpose.msra.mxu0 0.0
        %520 = vmatprep.subr.mxu0 0.0
        %521 = vmatpush1.xpose.msra.mxu0 0.0
        %522 = vmatprep.subr.mxu0 0.0
        %523 = vmatpush1.xpose.msra.mxu0 0.0
        %524 = vmatprep.subr.mxu0 0.0
        %525 = vmatpush1.xpose.msra.mxu0 0.0
        %526 = vmatprep.subr.mxu0 0.0
        %527 = vmatpush1.xpose.msra.mxu0 0.0
        %528 = vmatprep.subr.mxu0 0.0
        %529 = vmatpush1.xpose.msra.mxu0 0.0
        %530 = vmatprep.subr.mxu0 0.0
        %531 = vmatpush1.xpose.msra.mxu0 0.0
        %532 = vmatprep.subr.mxu0 0.0
        %533 = vmatpush1.xpose.msra.mxu0 0.0
        %534 = vmatprep.subr.mxu0 0.0
        %535 = vmatpush1.xpose.msra.mxu0 0.0
        %536 = vmatprep.subr.mxu0 0.0
        %537 = vmatpush1.xpose.msra.mxu0 0.0
        %538 = vmatprep.subr.mxu0 0.0
        %539 = vmatpush1.xpose.msra.mxu0 0.0
        %540 = vmatprep.subr.mxu0 0.0
        %541 = vmatpush1.xpose.msra.mxu0 0.0
        %542 = vmatprep.subr.mxu0 0.0
        %543 = vmatpush1.xpose.msra.mxu0 0.0
        %544 = vmatprep.subr.mxu0 0.0
        %545 = vmatpush1.xpose.msra.mxu0 0.0
        %546 = vmatprep.subr.mxu0 0.0
        %547 = vmatpush1.xpose.msra.mxu0 0.0
        %548 = vmatprep.mubr.f32.mxu0 0.0
        %549 = vmatmul.mubr.f32.gmra.mrb[0].mxu0 %v431
        %v550 = vpop.f32.mrb[0].mxu0
        %v551 = vadd.f32 %v422, %v550
        %v552 = vpop.f32.mrb[0].mxu0
        %553 = vmatprep.mubr.f32.mxu0 0.0
        %554 = vmatmul.mubr.f32.gmra.mrb[0].mxu0 %v434
        %v555 = vpop.f32.mrb[0].mxu0
        %v556 = vadd.f32 %v427, %v555
        %v557 = vpop.f32.mrb[0].mxu0
        %558 = vdwg.mxu0
        %v559 = vtanh.pop %v551
        %v560 = vtanh.pop %v556
        %562 = vset.pattern.permute.xlu0 0
        %563 = vperm.xlu0 %562, %v392
        %v564 = vpop.permute.xlu0 %563
        %vm566 = vcmask 97280
        %v568 = vsel %vm566, %v391, 0
        %vm570 = vcmask 1043456
        %v572 = vsel %vm570, %v560, 0
        %574 = vmatprep.subr.mxu0 0.0
        %575 = vmatpush1.msra.mxu0 %v559
        %576 = vmatprep.subr.mxu0 0.0
        %577 = vmatpush1.msra.mxu0 %v572
        %578 = vmatprep.subr.mxu0 0.0
        %579 = vmatpush1.msra.mxu0 0.0
        %580 = vmatprep.subr.mxu0 0.0
        %581 = vmatpush1.msra.mxu0 0.0
        %582 = vmatprep.subr.mxu0 0.0
        %583 = vmatpush1.msra.mxu0 0.0
        %584 = vmatprep.subr.mxu0 0.0
        %585 = vmatpush1.msra.mxu0 0.0
        %586 = vmatprep.subr.mxu0 0.0
        %587 = vmatpush1.msra.mxu0 0.0
        %588 = vmatprep.subr.mxu0 0.0
        %589 = vmatpush1.msra.mxu0 0.0
        %590 = vmatprep.subr.mxu0 0.0
        %591 = vmatpush1.msra.mxu0 0.0
        %592 = vmatprep.subr.mxu0 0.0
        %593 = vmatpush1.msra.mxu0 0.0
        %594 = vmatprep.subr.mxu0 0.0
        %595 = vmatpush1.msra.mxu0 0.0
        %596 = vmatprep.subr.mxu0 0.0
        %597 = vmatpush1.msra.mxu0 0.0
        %598 = vmatprep.subr.mxu0 0.0
        %599 = vmatpush1.msra.mxu0 0.0
        %600 = vmatprep.subr.mxu0 0.0
        %601 = vmatpush1.msra.mxu0 0.0
        %602 = vmatprep.subr.mxu0 0.0
        %603 = vmatpush1.msra.mxu0 0.0
        %604 = vmatprep.subr.mxu0 0.0
        %605 = vmatpush1.msra.mxu0 0.0
        %606 = vmatprep.subr.mxu0 0.0
        %607 = vmatpush1.msra.mxu0 0.0
        %608 = vmatprep.subr.mxu0 0.0
        %609 = vmatpush1.msra.mxu0 0.0
        %610 = vmatprep.subr.mxu0 0.0
        %611 = vmatpush1.msra.mxu0 0.0
        %612 = vmatprep.subr.mxu0 0.0
        %613 = vmatpush1.msra.mxu0 0.0
        %614 = vmatprep.subr.mxu0 0.0
        %615 = vmatpush1.msra.mxu0 0.0
        %616 = vmatprep.subr.mxu0 0.0
        %617 = vmatpush1.msra.mxu0 0.0
        %618 = vmatprep.subr.mxu0 0.0
        %619 = vmatpush1.msra.mxu0 0.0
        %620 = vmatprep.subr.mxu0 0.0
        %621 = vmatpush1.msra.mxu0 0.0
        %622 = vmatprep.subr.mxu0 0.0
        %623 = vmatpush1.msra.mxu0 0.0
        %624 = vmatprep.subr.mxu0 0.0
        %625 = vmatpush1.msra.mxu0 0.0
        %626 = vmatprep.subr.mxu0 0.0
        %627 = vmatpush1.msra.mxu0 0.0
        %628 = vmatprep.subr.mxu0 0.0
        %629 = vmatpush1.msra.mxu0 0.0
        %630 = vmatprep.subr.mxu0 0.0
        %631 = vmatpush1.msra.mxu0 0.0
        %632 = vmatprep.subr.mxu0 0.0
        %633 = vmatpush1.msra.mxu0 0.0
        %634 = vmatprep.subr.mxu0 0.0
        %635 = vmatpush1.msra.mxu0 0.0
        %636 = vmatprep.subr.mxu0 0.0
        %637 = vmatpush1.msra.mxu0 0.0
        %638 = vmatprep.mubr.f32.mxu0 0.0
        %639 = vmatmul.mubr.f32.gmra.mrb[0].mxu0 %v568
        %v640 = vpop.f32.mrb[0].mxu0
        %v641 = vadd.f32 %v564, %v640
        %v642 = vpop.f32.mrb[0].mxu0
        %643 = vdwg.mxu0
        %v644 = vtanh.pop %v641
        %646 = vset.pattern.permute.xlu0 0
        %647 = vperm.xlu0 %646, %v395
        %v648 = vpop.permute.xlu0 %647
        %651 = vset.pattern.permute.xlu0 0
        %652 = vperm.xlu0 %651, %v396
        %v653 = vpop.permute.xlu0 %652
        %vm655 = vcmask 64512
        %v657 = vsel %vm655, %v393, 0
        %v660 = vsel %vm655, %v394, 0
        %662 = vmatprep.subr.mxu0 0.0
        %663 = vmatpush1.msra.mxu0 %v644
        %664 = vmatprep.subr.mxu0 0.0
        %665 = vmatpush1.msra.mxu0 0.0
        %666 = vmatprep.subr.mxu0 0.0
        %667 = vmatpush1.msra.mxu0 0.0
        %668 = vmatprep.subr.mxu0 0.0
        %669 = vmatpush1.msra.mxu0 0.0
        %670 = vmatprep.subr.mxu0 0.0
        %671 = vmatpush1.msra.mxu0 0.0
        %672 = vmatprep.subr.mxu0 0.0
        %673 = vmatpush1.msra.mxu0 0.0
        %674 = vmatprep.subr.mxu0 0.0
        %675 = vmatpush1.msra.mxu0 0.0
        %676 = vmatprep.subr.mxu0 0.0
        %677 = vmatpush1.msra.mxu0 0.0
        %678 = vmatprep.subr.mxu0 0.0
        %679 = vmatpush1.msra.mxu0 0.0
        %680 = vmatprep.subr.mxu0 0.0
        %681 = vmatpush1.msra.mxu0 0.0
        %682 = vmatprep.subr.mxu0 0.0
        %683 = vmatpush1.msra.mxu0 0.0
        %684 = vmatprep.subr.mxu0 0.0
        %685 = vmatpush1.msra.mxu0 0.0
        %686 = vmatprep.subr.mxu0 0.0
        %687 = vmatpush1.msra.mxu0 0.0
        %688 = vmatprep.subr.mxu0 0.0
        %689 = vmatpush1.msra.mxu0 0.0
        %690 = vmatprep.subr.mxu0 0.0
        %691 = vmatpush1.msra.mxu0 0.0
        %692 = vmatprep.subr.mxu0 0.0
        %693 = vmatpush1.msra.mxu0 0.0
        %694 = vmatprep.subr.mxu0 0.0
        %695 = vmatpush1.msra.mxu0 0.0
        %696 = vmatprep.subr.mxu0 0.0
        %697 = vmatpush1.msra.mxu0 0.0
        %698 = vmatprep.subr.mxu0 0.0
        %699 = vmatpush1.msra.mxu0 0.0
        %700 = vmatprep.subr.mxu0 0.0
        %701 = vmatpush1.msra.mxu0 0.0
        %702 = vmatprep.subr.mxu0 0.0
        %703 = vmatpush1.msra.mxu0 0.0
        %704 = vmatprep.subr.mxu0 0.0
        %705 = vmatpush1.msra.mxu0 0.0
        %706 = vmatprep.subr.mxu0 0.0
        %707 = vmatpush1.msra.mxu0 0.0
        %708 = vmatprep.subr.mxu0 0.0
        %709 = vmatpush1.msra.mxu0 0.0
        %710 = vmatprep.subr.mxu0 0.0
        %711 = vmatpush1.msra.mxu0 0.0
        %712 = vmatprep.subr.mxu0 0.0
        %713 = vmatpush1.msra.mxu0 0.0
        %714 = vmatprep.subr.mxu0 0.0
        %715 = vmatpush1.msra.mxu0 0.0
        %716 = vmatprep.subr.mxu0 0.0
        %717 = vmatpush1.msra.mxu0 0.0
        %718 = vmatprep.subr.mxu0 0.0
        %719 = vmatpush1.msra.mxu0 0.0
        %720 = vmatprep.subr.mxu0 0.0
        %721 = vmatpush1.msra.mxu0 0.0
        %722 = vmatprep.subr.mxu0 0.0
        %723 = vmatpush1.msra.mxu0 0.0
        %724 = vmatprep.subr.mxu0 0.0
        %725 = vmatpush1.msra.mxu0 0.0
        %726 = vmatprep.mubr.f32.mxu0 0.0
        %727 = vmatmul.mubr.f32.gmra.mrb[0].mxu0 %v657
        %v728 = vpop.f32.mrb[0].mxu0
        %v729 = vadd.f32 %v648, %v728
        %v730 = vpop.f32.mrb[0].mxu0
        %731 = vmatprep.mubr.f32.mxu0 0.0
        %732 = vmatmul.mubr.f32.gmra.mrb[0].mxu0 %v660
        %v733 = vpop.f32.mrb[0].mxu0
        %v734 = vadd.f32 %v653, %v733
        %v735 = vpop.f32.mrb[0].mxu0
        %736 = vdwg.mxu0
        %v737 = vtanh.pop %v729
        %v738 = vtanh.pop %v734
        %740 = vset.pattern.permute.xlu0 0
        %741 = vperm.xlu0 %740, %v399
        %v742 = vpop.permute.xlu0 %741
        %745 = vset.pattern.permute.xlu0 0
        %746 = vperm.xlu0 %745, %v400
        %v747 = vpop.permute.xlu0 %746
        %vm749 = vcmask 80896
        %v751 = vsel %vm749, %v397, 0
        %v754 = vsel %vm749, %v398, 0
        %vm756 = vcmask 1041408
        %v758 = vsel %vm756, %v738, 0
        %760 = vmatprep.subr.mxu0 0.0
        %761 = vmatpush1.msra.mxu0 %v737
        %762 = vmatprep.subr.mxu0 0.0
        %763 = vmatpush1.msra.mxu0 %v758
        %764 = vmatprep.subr.mxu0 0.0
        %765 = vmatpush1.msra.mxu0 0.0
        %766 = vmatprep.subr.mxu0 0.0
        %767 = vmatpush1.msra.mxu0 0.0
        %768 = vmatprep.subr.mxu0 0.0
        %769 = vmatpush1.msra.mxu0 0.0
        %770 = vmatprep.subr.mxu0 0.0
        %771 = vmatpush1.msra.mxu0 0.0
        %772 = vmatprep.subr.mxu0 0.0
        %773 = vmatpush1.msra.mxu0 0.0
        %774 = vmatprep.subr.mxu0 0.0
        %775 = vmatpush1.msra.mxu0 0.0
        %776 = vmatprep.subr.mxu0 0.0
        %777 = vmatpush1.msra.mxu0 0.0
        %778 = vmatprep.subr.mxu0 0.0
        %779 = vmatpush1.msra.mxu0 0.0
        %780 = vmatprep.subr.mxu0 0.0
        %781 = vmatpush1.msra.mxu0 0.0
        %782 = vmatprep.subr.mxu0 0.0
        %783 = vmatpush1.msra.mxu0 0.0
        %784 = vmatprep.subr.mxu0 0.0
        %785 = vmatpush1.msra.mxu0 0.0
        %786 = vmatprep.subr.mxu0 0.0
        %787 = vmatpush1.msra.mxu0 0.0
        %788 = vmatprep.subr.mxu0 0.0
        %789 = vmatpush1.msra.mxu0 0.0
        %790 = vmatprep.subr.mxu0 0.0
        %791 = vmatpush1.msra.mxu0 0.0
        %792 = vmatprep.subr.mxu0 0.0
        %793 = vmatpush1.msra.mxu0 0.0
        %794 = vmatprep.subr.mxu0 0.0
        %795 = vmatpush1.msra.mxu0 0.0
        %796 = vmatprep.subr.mxu0 0.0
        %797 = vmatpush1.msra.mxu0 0.0
        %798 = vmatprep.subr.mxu0 0.0
        %799 = vmatpush1.msra.mxu0 0.0
        %800 = vmatprep.subr.mxu0 0.0
        %801 = vmatpush1.msra.mxu0 0.0
        %802 = vmatprep.subr.mxu0 0.0
        %803 = vmatpush1.msra.mxu0 0.0
        %804 = vmatprep.subr.mxu0 0.0
        %805 = vmatpush1.msra.mxu0 0.0
        %806 = vmatprep.subr.mxu0 0.0
        %807 = vmatpush1.msra.mxu0 0.0
        %808 = vmatprep.subr.mxu0 0.0
        %809 = vmatpush1.msra.mxu0 0.0
        %810 = vmatprep.subr.mxu0 0.0
        %811 = vmatpush1.msra.mxu0 0.0
        %812 = vmatprep.subr.mxu0 0.0
        %813 = vmatpush1.msra.mxu0 0.0
        %814 = vmatprep.subr.mxu0 0.0
        %815 = vmatpush1.msra.mxu0 0.0
        %816 = vmatprep.subr.mxu0 0.0
        %817 = vmatpush1.msra.mxu0 0.0
        %818 = vmatprep.subr.mxu0 0.0
        %819 = vmatpush1.msra.mxu0 0.0
        %820 = vmatprep.subr.mxu0 0.0
        %821 = vmatpush1.msra.mxu0 0.0
        %822 = vmatprep.subr.mxu0 0.0
        %823 = vmatpush1.msra.mxu0 0.0
        %824 = vmatprep.mubr.f32.mxu0 0.0
        %825 = vmatmul.mubr.f32.gmra.mrb[0].mxu0 %v751
        %v826 = vpop.f32.mrb[0].mxu0
        %v827 = vadd.f32 %v742, %v826
        %v828 = vpop.f32.mrb[0].mxu0
        %829 = vmatprep.mubr.f32.mxu0 0.0
        %830 = vmatmul.mubr.f32.gmra.mrb[0].mxu0 %v754
        %v831 = vpop.f32.mrb[0].mxu0
        %v832 = vadd.f32 %v747, %v831
        %v833 = vpop.f32.mrb[0].mxu0
        %834 = vdwg.mxu0
        %v835 = vtanh.pop %v827
        %v836 = vtanh.pop %v832
        %838 = vset.pattern.permute.xlu0 0
        %839 = vperm.xlu0 %838, %v402
        %v840 = vpop.permute.xlu0 %839
        %v843 = vsel %vm566, %v401, 0
        %v846 = vsel %vm570, %v836, 0
        %848 = vmatprep.subr.mxu0 0.0
        %849 = vmatpush1.msra.mxu0 %v835
        %850 = vmatprep.subr.mxu0 0.0
        %851 = vmatpush1.msra.mxu0 %v846
        %852 = vmatprep.subr.mxu0 0.0
        %853 = vmatpush1.msra.mxu0 0.0
        %854 = vmatprep.subr.mxu0 0.0
        %855 = vmatpush1.msra.mxu0 0.0
        %856 = vmatprep.subr.mxu0 0.0
        %857 = vmatpush1.msra.mxu0 0.0
        %858 = vmatprep.subr.mxu0 0.0
        %859 = vmatpush1.msra.mxu0 0.0
        %860 = vmatprep.subr.mxu0 0.0
        %861 = vmatpush1.msra.mxu0 0.0
        %862 = vmatprep.subr.mxu0 0.0
        %863 = vmatpush1.msra.mxu0 0.0
        %864 = vmatprep.subr.mxu0 0.0
        %865 = vmatpush1.msra.mxu0 0.0
        %866 = vmatprep.subr.mxu0 0.0
        %867 = vmatpush1.msra.mxu0 0.0
        %868 = vmatprep.subr.mxu0 0.0
        %869 = vmatpush1.msra.mxu0 0.0
        %870 = vmatprep.subr.mxu0 0.0
        %871 = vmatpush1.msra.mxu0 0.0
        %872 = vmatprep.subr.mxu0 0.0
        %873 = vmatpush1.msra.mxu0 0.0
        %874 = vmatprep.subr.mxu0 0.0
        %875 = vmatpush1.msra.mxu0 0.0
        %876 = vmatprep.subr.mxu0 0.0
        %877 = vmatpush1.msra.mxu0 0.0
        %878 = vmatprep.subr.mxu0 0.0
        %879 = vmatpush1.msra.mxu0 0.0
        %880 = vmatprep.subr.mxu0 0.0
        %881 = vmatpush1.msra.mxu0 0.0
        %882 = vmatprep.subr.mxu0 0.0
        %883 = vmatpush1.msra.mxu0 0.0
        %884 = vmatprep.subr.mxu0 0.0
        %885 = vmatpush1.msra.mxu0 0.0
        %886 = vmatprep.subr.mxu0 0.0
        %887 = vmatpush1.msra.mxu0 0.0
        %888 = vmatprep.subr.mxu0 0.0
        %889 = vmatpush1.msra.mxu0 0.0
        %890 = vmatprep.subr.mxu0 0.0
        %891 = vmatpush1.msra.mxu0 0.0
        %892 = vmatprep.subr.mxu0 0.0
        %893 = vmatpush1.msra.mxu0 0.0
        %894 = vmatprep.subr.mxu0 0.0
        %895 = vmatpush1.msra.mxu0 0.0
        %896 = vmatprep.subr.mxu0 0.0
        %897 = vmatpush1.msra.mxu0 0.0
        %898 = vmatprep.subr.mxu0 0.0
        %899 = vmatpush1.msra.mxu0 0.0
        %900 = vmatprep.subr.mxu0 0.0
        %901 = vmatpush1.msra.mxu0 0.0
        %902 = vmatprep.subr.mxu0 0.0
        %903 = vmatpush1.msra.mxu0 0.0
        %904 = vmatprep.subr.mxu0 0.0
        %905 = vmatpush1.msra.mxu0 0.0
        %906 = vmatprep.subr.mxu0 0.0
        %907 = vmatpush1.msra.mxu0 0.0
        %908 = vmatprep.subr.mxu0 0.0
        %909 = vmatpush1.msra.mxu0 0.0
        %910 = vmatprep.subr.mxu0 0.0
        %911 = vmatpush1.msra.mxu0 0.0
        %912 = vmatprep.mubr.f32.mxu0 0.0
        %913 = vmatmul.mubr.f32.gmra.mrb[0].mxu0 %v843
        %v914 = vpop.f32.mrb[0].mxu0
        %v915 = vadd.f32 %v840, %v914
        %v916 = vpop.f32.mrb[0].mxu0
        %917 = vdwg.mxu0
        %918 = vst [vmem:[%s380] sm:$0x7] %v915
        %s919 = sand.u32 %s269, 1
        %s920 = scalar_lea.sflag [#allocation3], %s919
        %s921 = sand.u32 %s269, 1
        %s922 = smul.addr %s921, 4
        %s923 = scalar_lea.vmem [#allocation2], %s922
        // Predicated region
        $region65: #{net_forward.1} parent=63 // pred_check
          %p924 = pneg %p279
        $region66: #{net_forward.1} parent=63 // pred_check_branch
          %926 = sbr.rel (%p924) target = $region68
        $region67: #{net_forward.1} parent=63 // pred_region
          %s928 = ssub.s32 64, 64
          %929 = vsyncadd %s920, %s928
          %s930 = smul.addr %s25, 64
          %s931 = scalar_lea.hbm %s11, %s930
          %s933 = sshll.u32 %s923, 4
          %s934 = int_to_ptr.vmem [resolvable:$true] %s933
          %936 = dma.vmem_to_hbm [thread:$0]  %s934, 64, %s931, %s920
        $region68: #{net_forward.1} parent=63 // pred_fallthru
          _
      $region64: #{net_forward.1} parent=5 // pred_fallthru
        _
      %p937 = scmp.le.s32.totalorder 2, %s20
      // Predicated region
      $region69: #{net_forward.1} parent=5 // pred_check
        %p938 = pneg %p937
      $region70: #{net_forward.1} parent=5 // pred_check_branch
        %940 = sbr.rel (%p938) target = $region72
      $region71: #{net_forward.1} parent=5 // pred_region
        %s941 = ssub.s32 %s20, 2
        // Predicated region
        $region73: #{net_forward.1} parent=71 // pred_check
          %p942 = pneg %p285
        $region74: #{net_forward.1} parent=71 // pred_check_branch
          %944 = sbr.rel (%p942) target = $region76
        $region75: #{net_forward.1} parent=71 // pred_region
          %s945 = sand.u32 %s270, 1
          %s946 = scalar_lea.sflag [#allocation3], %s945
          %s947 = sand.u32 %s270, 1
          %s948 = smul.addr %s947, 4
          %s949 = scalar_lea.vmem [#allocation2], %s948
          %950 = dma.done %s946, 64
        $region76: #{net_forward.1} parent=71 // pred_fallthru
          _
      $region72: #{net_forward.1} parent=5 // pred_fallthru
        _
    $region6: #{net_forward.1} parent=1 // loop_footer
      %s24 = sadd.s32 1, %s20
    $region7: #{net_forward.1} parent=1 // loop_footer_branch
      %19 = sbr.rel target = $region3
    $region8: #{net_forward.1} parent=1 // loop_exit
      _
    %951 = vsyncpa [#allocation3], 1
    %s952 = scalar_lea.sflag [#allocation3], 1
    %953 = vsyncpa %s952, 1

</llo_original>
